<compile_context>
chip_gen: v5e
topology: v5e:2x2
jax: 0.10.0
libtpu: 0.0.40
codegen_flags: <defaults>
</compile_context>

<pallas_src>
import math
import functools

import jax
import jax.numpy as jnp
from jax.experimental import pallas as pl
from jax.experimental.pallas import tpu as pltpu


LN_EPS = 1e-5  # PyTorch nn.LayerNorm default


def positionalencoding1d(d_model: int, length: int) -> jnp.ndarray:
    """JAX port of the torch positionalencoding1d (float32)."""
    if d_model % 2 != 0:
        raise ValueError(
            f"Cannot use sin/cos positional encoding with odd dim (got dim={d_model})"
        )
    position = jnp.arange(0, length, dtype=jnp.float32)[:, None]              # (L, 1)
    div_term = jnp.exp(
        jnp.arange(0, d_model, 2, dtype=jnp.float32) * -(math.log(10000.0) / d_model)
    )                                                                         # (D/2,)
    pe = jnp.zeros((length, d_model), dtype=jnp.float32)
    pe = pe.at[:, 0::2].set(jnp.sin(position * div_term))
    pe = pe.at[:, 1::2].set(jnp.cos(position * div_term))
    return pe


def _patch_embed_kernel(p_ref, w_ref, b_ref, g_ref, pb_ref, o_ref, *,
                        g_imgs, tn, transpose_out):
    """One row-tile of TM = g_imgs * tn flattened patch rows.

    p_ref:  (TM, K)   bf16 patches (B*N rows folded together)
    w_ref:  (K, D)    bf16 flattened conv weight, (c, kh, kw) feature order
    b_ref:  (1, D)    f32 conv bias
    g_ref:  (1, D)    f32 LayerNorm gamma
    pb_ref: (tn, D)   f32 pos_embed + LayerNorm beta (broadcast over g_imgs)
    o_ref:  (g_imgs, D, tn) if transpose_out else (g_imgs, tn, D)
    """
    # Patch projection (== Conv2d with kernel=stride=patch_size) on the MXU:
    # bf16 inputs, f32 accumulation.
    y = jnp.dot(p_ref[...], w_ref[...], preferred_element_type=jnp.float32)
    y = y + b_ref[...]                                        # (TM, D) f32

    # Two-pass LayerNorm on the VMEM-resident tile (avoids the catastrophic
    # cancellation of the one-pass E[y^2]-E[y]^2 form).
    mean = jnp.mean(y, axis=-1, keepdims=True)                # (TM, 1)
    yc = y - mean
    var = jnp.mean(yc * yc, axis=-1, keepdims=True)           # (TM, 1)
    inv = jax.lax.rsqrt(var + LN_EPS)                         # EUP
    y = yc * (inv * g_ref[...])                               # (TM, D)

    d = y.shape[-1]
    # Add (pos + beta), broadcasting the (tn, D) table over the images in the tile.
    y = y.reshape(g_imgs, tn, d) + pb_ref[...]                # (g_imgs, tn, D)

    if transpose_out:
        # In-VMEM minor-dim transpose so the kernel stores the module's
        # (B, D, N) layout directly (no post-kernel HBM transpose pass).
        # Kept as jnp.transpose (known-good lowering for the minor-dim swap).
        y = jnp.transpose(y, (0, 2, 1))                       # (g_imgs, D, tn)
    o_ref[...] = y.astype(o_ref.dtype)


def _pick_row_tile(rows, n, *, lane_dense_tn, bytes_per_row, budget_bytes,
                   min_steps=2):
    """Rows of the (B*N, K) patch matrix per grid step.

    Constraints:
      * tm divides rows,
      * tm is a multiple of N (whole images per step) or a divisor of N, so
        the positional table tiles periodically and output blocks stay
        rectangular,
      * tm is sublane-friendly for the bf16 patch tile (multiple of 16),
      * when storing the transposed (G, D, Tn) layout, a sub-image tile needs
        Tn % 128 == 0 (lane-dense store).
    Preference: the largest tm that fits the VMEM budget AND leaves at least
    `min_steps` grid steps (v7x megacore), else the largest that fits.
    """
    cands = set()
    t = n
    while t <= rows:                                  # whole-image multiples
        if rows % t == 0 and (t % 16 == 0 or t == rows):
            cands.add(t)
        t += n
    sub_align = 128 if lane_dense_tn else 16
    t = sub_align
    while t < n:                                      # sub-image divisors
        if n % t == 0 and rows % t == 0:
            cands.add(t)
        t += sub_align
    if not cands:
        cands = {n if rows % n == 0 else rows}
    cands = sorted(cands, reverse=True)
    for t in cands:
        if t * bytes_per_row <= budget_bytes and rows // t >= min_steps:
            return t
    for t in cands:
        if t * bytes_per_row <= budget_bytes:
            return t
    return cands[-1]


@functools.partial(jax.jit, static_argnames=("patch_size",))
def patch_embed_forward(x, conv_w, conv_b, ln_gamma, ln_beta, pos_embed, *, patch_size):
    """x: (B, C, H, W) NCHW float32. Returns (B, D, H/ps, W/ps) float32."""
    B, C, H, W = x.shape
    D = conv_w.shape[0]
    ps = patch_size
    Hp, Wp = H // ps, W // ps
    N = Hp * Wp
    K = C * ps * ps
    rows = B * N

    # --- glue: non-overlapping patch extraction, feature order (c, kh, kw) ---
    # Done in bf16 so this (still one XLA pass over HBM) moves half the bytes,
    # and the kernel's streamed patch tiles are bf16 as well.
    # TODO(synk): fully fusing the (c, kh, kw) interleave into the kernel needs
    # an in-VMEM rank-5 relayout / manual-DMA gather (no clean rectangular
    # BlockSpec); for this module (K = C*ps^2 = 4 << D) the f32 output
    # writeback dominates HBM traffic, so the remaining pass is secondary.
    xb = x.astype(jnp.bfloat16)
    patches = xb.reshape(B, C, Hp, ps, Wp, ps)
    patches = patches.transpose(0, 2, 4, 1, 3, 5).reshape(rows, K)   # (B*N, K) bf16

    w_flat = conv_w.reshape(D, K).T.astype(jnp.bfloat16)             # (K, D) bf16, resident
    b_row = conv_b.reshape(1, D).astype(jnp.float32)
    g_row = ln_gamma.reshape(1, D).astype(jnp.float32)
    # Fold LayerNorm beta into the positional table (one add here instead of
    # one (TM, D) VPU add per grid step).
    pos_pb = pos_embed.astype(jnp.float32) + ln_beta.reshape(1, D).astype(jnp.float32)  # (N, D)

    # Static output-layout choice (lane-dense stores are the biggest measured
    # store-side lever): keep the in-kernel transpose -> (B, D, N) when D is
    # not 128-aligned (neither layout is lane-dense; transposing here saves a
    # whole post-kernel HBM pass) or when N itself is 128-aligned; otherwise
    # store lane-dense (B, N, D) and transpose once in XLA afterwards.
    transpose_out = (D % 128 != 0) or (N % 128 == 0)

    bytes_per_row = 2 * K * 2 + 2 * D * 4 + 4 * D * 4   # dbl-buffered in/out + f32 temps
    tm = _pick_row_tile(rows, N,
                        lane_dense_tn=transpose_out,
                        bytes_per_row=bytes_per_row,
                        budget_bytes=24 * 1024 * 1024,
                        min_steps=2)
    g_imgs = max(tm // N, 1)          # whole images per step (tm >= N case)
    tn = min(tm, N)                   # patch rows per image per step
    nb = N // tn                      # sub-image blocks per image
    grid = (rows // tm,)

    resident = dict(pipeline_mode=pl.Buffered(1))   # constant blocks: no dead 2nd buffer

    in_specs = [
        pl.BlockSpec((tm, K), lambda i: (i, 0)),                     # patches stream
        pl.BlockSpec((K, D), lambda i: (0, 0), **resident),          # weight (resident)
        pl.BlockSpec((1, D), lambda i: (0, 0), **resident),          # bias (resident)
        pl.BlockSpec((1, D), lambda i: (0, 0), **resident),          # gamma (resident)
    ]
    if nb == 1:
        in_specs.append(pl.BlockSpec((N, D), lambda i: (0, 0), **resident))   # pos+beta
    else:
        in_specs.append(pl.BlockSpec((tn, D), lambda i: (i % nb, 0)))         # pos+beta

    if transpose_out:
        out_shape = jax.ShapeDtypeStruct((B, D, N), jnp.float32)
        if nb == 1:
            out_spec = pl.BlockSpec((g_imgs, D, tn), lambda i: (i, 0, 0))
        else:
            out_spec = pl.BlockSpec((1, D, tn), lambda i: (i // nb, 0, i % nb))
    else:
        out_shape = jax.ShapeDtypeStruct((B, N, D), jnp.float32)
        if nb == 1:
            out_spec = pl.BlockSpec((g_imgs, tn, D), lambda i: (i, 0, 0))
        else:
            out_spec = pl.BlockSpec((1, tn, D), lambda i: (i // nb, i % nb, 0))

    # Explicit scoped-VMEM limit (v5e default is 16 MiB; keep headroom on v7x's
    # 64 MiB physical).
    vmem_need = (2 * tm * K * 2                       # patches (bf16, dbl-buffered)
                 + K * D * 2 + 2 * D * 4              # weight + bias + gamma
                 + (1 if nb == 1 else 2) * tn * D * 4 # pos (+beta)
                 + 2 * g_imgs * D * tn * 4            # output block (dbl-buffered)
                 + 4 * tm * D * 4)                    # f32 intermediates slack
    vmem_limit = int(min(max(2 * vmem_need, 16 * 1024 * 1024), 48 * 1024 * 1024))

    cost = pl.CostEstimate(
        flops=2 * rows * K * D + 10 * rows * D,
        transcendentals=rows,
        bytes_accessed=rows * K * 2 + K * D * 2 + N * D * 4 + rows * D * 4,
    )

    kernel = functools.partial(_patch_embed_kernel,
                               g_imgs=g_imgs, tn=tn, transpose_out=transpose_out)

    out = pl.pallas_call(
        kernel,
        out_shape=out_shape,
        grid_spec=pltpu.PrefetchScalarGridSpec(
            num_scalar_prefetch=0,
            grid=grid,
            in_specs=in_specs,
            out_specs=out_spec,
        ),
        compiler_params=pltpu.CompilerParams(
            dimension_semantics=("parallel",),
            vmem_limit_bytes=vmem_limit,
        ),
        cost_estimate=cost,
    )(patches, w_flat, b_row, g_row, pos_pb)

    if transpose_out:
        # (B, D, N) -> (B, D, Hp, Wp) is a free reshape (no transpose, no HBM pass).
        return out.reshape(B, D, Hp, Wp)
    # Lane-dense (B, N, D) store path: one XLA transpose to the module layout.
    return out.transpose(0, 2, 1).reshape(B, D, Hp, Wp)


def _reference_forward(x, conv_w, conv_b, ln_gamma, ln_beta, pos_embed, patch_size,
                       quantize_bf16=False):
    """Pure-JAX reference mirroring the PyTorch forward.

    quantize_bf16=True rounds the conv inputs to bf16 (matching the kernel's
    MXU input precision) so the comparison isolates kernel bugs from the
    intentional bf16 quantization of the projection.
    """
    B, C, H, W = x.shape
    D = conv_w.shape[0]
    ps = patch_size
    Hp, Wp = H // ps, W // ps
    if quantize_bf16:
        x = x.astype(jnp.bfloat16).astype(jnp.float32)
        conv_w = conv_w.astype(jnp.bfloat16).astype(jnp.float32)
    y = jax.lax.conv_general_dilated(
        x, conv_w, window_strides=(ps, ps), padding="VALID",
        dimension_numbers=("NCHW", "OIHW", "NCHW"),
        precision=jax.lax.Precision.HIGHEST,
    ) + conv_b[None, :, None, None]
    y = y.reshape(B, D, Hp * Wp).transpose(0, 2, 1)               # (B, N, D)
    mean = jnp.mean(y, axis=-1, keepdims=True)
    var = jnp.mean(jnp.square(y - mean), axis=-1, keepdims=True)
    y = (y - mean) * jax.lax.rsqrt(var + LN_EPS) * ln_gamma + ln_beta
    y = y + pos_embed
    return y.transpose(0, 2, 1).reshape(B, D, Hp, Wp)


if __name__ == "__main__":
    # Small config consistent with the module (img_size=16, patch_size=2,
    # in_chans=1, embed_dim=24 -> N = (16/2)^2 = 64 patches per image).
    B, C, H, W = 2, 1, 16, 16
    patch_size = 2
    embed_dim = 24
    N = (H // patch_size) * (W // patch_size)

    key = jax.random.PRNGKey(0)
    kx, kw, kb = jax.random.split(key, 3)

    x = jax.random.normal(kx, (B, C, H, W), dtype=jnp.float32)
    # Conv2d(in_chans, embed_dim, kernel=patch, stride=patch) parameters.
    conv_w = jax.random.normal(
        kw, (embed_dim, C, patch_size, patch_size), dtype=jnp.float32) * 0.1
    conv_b = jax.random.normal(kb, (embed_dim,), dtype=jnp.float32) * 0.1
    # LayerNorm(embed_dim) default init.
    ln_gamma = jnp.ones((embed_dim,), dtype=jnp.float32)
    ln_beta = jnp.zeros((embed_dim,), dtype=jnp.float32)
    # Positional encoding for N positions.
    pos_embed = positionalencoding1d(embed_dim, N)

    out = patch_embed_forward(
        x, conv_w, conv_b, ln_gamma, ln_beta, pos_embed, patch_size=patch_size
    )
    out = jax.block_until_ready(out)
    assert out.shape == (B, embed_dim, H // patch_size, W // patch_size), out.shape

    # Tight check vs a reference with the same bf16 rounding as the MXU inputs.
    ref_q = _reference_forward(x, conv_w, conv_b, ln_gamma, ln_beta, pos_embed,
                               patch_size, quantize_bf16=True)
    assert jnp.allclose(out, ref_q, rtol=1e-3, atol=1e-3), \
        "mismatch vs bf16-matched reference"

    # Loose check vs the exact f32 PyTorch-equivalent forward (bf16 inputs only
    # differ by quantization noise).
    ref_f = _reference_forward(x, conv_w, conv_b, ln_gamma, ln_beta, pos_embed,
                               patch_size, quantize_bf16=False)
    assert jnp.allclose(out, ref_f, rtol=5e-2, atol=5e-2), \
        "mismatch vs f32 reference"

    print("KERNEL_OK")
</pallas_src>

<mosaic_0001>
module attributes {stable_mosaic.version = 11 : i64} {
  func.func @_patch_embed_kernel(%arg0: i32, %arg1: memref<64x4xbf16, #tpu.memory_space<vmem>>, %arg2: memref<4x24xbf16, #tpu.memory_space<vmem>>, %arg3: memref<1x24xf32, #tpu.memory_space<vmem>>, %arg4: memref<1x24xf32, #tpu.memory_space<vmem>>, %arg5: memref<64x24xf32, #tpu.memory_space<vmem>>, %arg6: memref<1x24x64xf32, #tpu.memory_space<vmem>>) attributes {dimension_semantics = [#tpu.dimension_semantics<parallel>], iteration_bounds = array<i64: 2>, scalar_prefetch = 0 : i64, scratch_operands = 0 : i64, tpu.core_type = #tpu.core_type<tc>, window_params = [{transform_indices = @transform_0, window_bounds = array<i64: 64, 4>}, {pipeline_mode = #tpu.pipeline_mode<synchronous>, transform_indices = @transform_1, window_bounds = array<i64: 4, 24>}, {pipeline_mode = #tpu.pipeline_mode<synchronous>, transform_indices = @transform_2, window_bounds = array<i64: 1, 24>}, {pipeline_mode = #tpu.pipeline_mode<synchronous>, transform_indices = @transform_3, window_bounds = array<i64: 1, 24>}, {pipeline_mode = #tpu.pipeline_mode<synchronous>, transform_indices = @transform_4, window_bounds = array<i64: 64, 24>}, {transform_indices = @transform_5, window_bounds = array<i64: 1, 24, 64>}]} {
    %c0 = arith.constant 0 : index
    %c0_0 = arith.constant 0 : index
    %0 = vector.load %arg1[%c0, %c0_0] : memref<64x4xbf16, #tpu.memory_space<vmem>>, vector<64x4xbf16>
    %c0_1 = arith.constant 0 : index
    %c0_2 = arith.constant 0 : index
    %1 = vector.load %arg2[%c0_1, %c0_2] : memref<4x24xbf16, #tpu.memory_space<vmem>>, vector<4x24xbf16>
    %cst = arith.constant dense<0.000000e+00> : vector<64x24xf32>
    %2 = tpu.matmul %0, %1, %cst {dimension_numbers = #tpu.dot_dimension_numbers<[1], [0], [0], [1], [0, 0, 1, 1], [], []>} : vector<64x4xbf16>, vector<4x24xbf16>, vector<64x24xf32> -> vector<64x24xf32>
    %c0_3 = arith.constant 0 : index
    %c0_4 = arith.constant 0 : index
    %3 = vector.load %arg3[%c0_3, %c0_4] : memref<1x24xf32, #tpu.memory_space<vmem>>, vector<1x24xf32>
    %4 = vector.broadcast %3 : vector<1x24xf32> to vector<64x24xf32>
    %5 = arith.addf %2, %4 : vector<64x24xf32>
    %cst_5 = arith.constant dense<0.000000e+00> : vector<64xf32>
    %6 = vector.multi_reduction <add>, %5, %cst_5 [1] : vector<64x24xf32> to vector<64xf32>
    %7 = vector.shape_cast %6 : vector<64xf32> to vector<64x1xf32>
    %cst_6 = arith.constant 2.400000e+01 : f32
    %8 = vector.broadcast %cst_6 : f32 to vector<64x1xf32>
    %9 = arith.divf %7, %8 : vector<64x1xf32>
    %10 = vector.broadcast %9 : vector<64x1xf32> to vector<64x24xf32>
    %11 = arith.subf %5, %10 : vector<64x24xf32>
    %12 = arith.mulf %11, %11 : vector<64x24xf32>
    %cst_7 = arith.constant dense<0.000000e+00> : vector<64xf32>
    %13 = vector.multi_reduction <add>, %12, %cst_7 [1] : vector<64x24xf32> to vector<64xf32>
    %14 = vector.shape_cast %13 : vector<64xf32> to vector<64x1xf32>
    %cst_8 = arith.constant 2.400000e+01 : f32
    %15 = vector.broadcast %cst_8 : f32 to vector<64x1xf32>
    %16 = arith.divf %14, %15 : vector<64x1xf32>
    %cst_9 = arith.constant 9.99999974E-6 : f32
    %17 = vector.broadcast %cst_9 : f32 to vector<64x1xf32>
    %18 = arith.addf %16, %17 : vector<64x1xf32>
    %19 = math.rsqrt %18 : vector<64x1xf32>
    %c0_10 = arith.constant 0 : index
    %c0_11 = arith.constant 0 : index
    %20 = vector.load %arg4[%c0_10, %c0_11] : memref<1x24xf32, #tpu.memory_space<vmem>>, vector<1x24xf32>
    %21 = vector.broadcast %19 : vector<64x1xf32> to vector<64x24xf32>
    %22 = vector.broadcast %20 : vector<1x24xf32> to vector<64x24xf32>
    %23 = arith.mulf %21, %22 : vector<64x24xf32>
    %24 = arith.mulf %11, %23 : vector<64x24xf32>
    %25 = vector.shape_cast %24 : vector<64x24xf32> to vector<1x64x24xf32>
    %c0_12 = arith.constant 0 : index
    %c0_13 = arith.constant 0 : index
    %26 = vector.load %arg5[%c0_12, %c0_13] : memref<64x24xf32, #tpu.memory_space<vmem>>, vector<64x24xf32>
    %27 = vector.shape_cast %26 : vector<64x24xf32> to vector<1x64x24xf32>
    %28 = arith.addf %25, %27 : vector<1x64x24xf32>
    %29 = tpu.transpose %28, [0, 2, 1] : vector<1x64x24xf32> -> vector<1x24x64xf32>
    %c0_14 = arith.constant 0 : index
    %c0_15 = arith.constant 0 : index
    %c0_16 = arith.constant 0 : index
    %30 = vector.load %arg6[%c0_14, %c0_15, %c0_16] : memref<1x24x64xf32, #tpu.memory_space<vmem>>, vector<1x24x64xf32>
    tpu.vector_store %arg6[%c0_14, %c0_15, %c0_16], %29 {strides = array<i32>} : memref<1x24x64xf32, #tpu.memory_space<vmem>>, vector<1x24x64xf32>,
    return
  }
  func.func @transform_0(%arg0: i32) -> (i32, i32) {
    %c0_i32 = arith.constant 0 : i32
    %c0_i32_0 = arith.constant 0 : i32
    return %arg0, %c0_i32 : i32, i32
  }
  func.func @transform_1(%arg0: i32) -> (i32, i32) {
    %c0_i32 = arith.constant 0 : i32
    %c0_i32_0 = arith.constant 0 : i32
    %c0_i32_1 = arith.constant 0 : i32
    return %c0_i32, %c0_i32_0 : i32, i32
  }
  func.func @transform_2(%arg0: i32) -> (i32, i32) {
    %c0_i32 = arith.constant 0 : i32
    %c0_i32_0 = arith.constant 0 : i32
    %c0_i32_1 = arith.constant 0 : i32
    return %c0_i32, %c0_i32_0 : i32, i32
  }
  func.func @transform_3(%arg0: i32) -> (i32, i32) {
    %c0_i32 = arith.constant 0 : i32
    %c0_i32_0 = arith.constant 0 : i32
    %c0_i32_1 = arith.constant 0 : i32
    return %c0_i32, %c0_i32_0 : i32, i32
  }
  func.func @transform_4(%arg0: i32) -> (i32, i32) {
    %c0_i32 = arith.constant 0 : i32
    %c0_i32_0 = arith.constant 0 : i32
    %c0_i32_1 = arith.constant 0 : i32
    return %c0_i32, %c0_i32_0 : i32, i32
  }
  func.func @transform_5(%arg0: i32) -> (i32, i32, i32) {
    %c0_i32 = arith.constant 0 : i32
    %c0_i32_0 = arith.constant 0 : i32
    %c0_i32_1 = arith.constant 0 : i32
    return %arg0, %c0_i32, %c0_i32_0 : i32, i32, i32
  }
}

</mosaic_0001>

<llo_original>
// kernel: patch_embed_forward.1
$region0: #{patch_embed_forward.1}
  #allocation0 [shape = 'u32[]', space=smem, size = 0x4, offset = 0x4, fixed_abs, tag = 'smem constant byte address 0x4 - core index']
  #allocation1 [shape = 'u32[72,128]{1,0:T(1,128)}', space=vmem, size = 0x9000, scoped, tag = 'internal scratch']
  %s0 = inlined_call_operand.vmem [shape: bf16[128,4], index: 0, kind: input, shape index: {}]
  %s1 = inlined_call_operand.vmem [shape: bf16[4,24], index: 1, kind: input, shape index: {}]
  %s2 = inlined_call_operand.vmem [shape: f32[1,24], index: 2, kind: input, shape index: {}]
  %s3 = inlined_call_operand.vmem [shape: f32[1,24], index: 3, kind: input, shape index: {}]
  %s4 = inlined_call_operand.vmem [shape: f32[64,24], index: 4, kind: input, shape index: {}]
  %s5 = inlined_call_operand.vmem [shape: f32[2,24,64], index: 5, kind: output, shape index: {}]
  %s6 = sld [smem:[#allocation0]]
  $region53: #{patch_embed_forward.1} parent=0
    _
  %s8 = ssub.s32 1, %s6
  %s9 = scalar_select 0, %s8, %s6
  loop: start=0, step=1, limit=4
  $region2: #{patch_embed_forward.1} parent=0 // loop_pre_header
    _
  $region3: #{patch_embed_forward.1} parent=0 // loop_header
    %s11 = sphi 0, %s15
    %p12 = scmp.ge.s32.totalorder %s11, 4
    %s21 = sphi 0, %s23
    %s24 = sphi 0, %s21
    %s25 = sphi 0, %s24
    %s41 = sphi 0, %s25
    %s45 = sphi 0, %s45
    %s47 = sphi 0, %s45
    %s48 = sphi 0, %s47
    %s62 = sphi 0, %s48
    %s66 = sphi 0, %s66
    %s68 = sphi 0, %s66
    %s69 = sphi 0, %s68
    %s83 = sphi 0, %s69
    %s87 = sphi 0, %s87
    %s89 = sphi 0, %s87
    %s90 = sphi 0, %s89
    %s104 = sphi 0, %s90
    %s108 = sphi 0, %s108
    %s110 = sphi 0, %s108
    %s111 = sphi 0, %s110
    %s125 = sphi 0, %s111
    %s131 = sphi 0, %s133
    %s134 = sphi 0, %s131
    %s135 = sphi 0, %s134
    %s151 = sphi 0, %s135
  $region4: #{patch_embed_forward.1} parent=0 // loop_header_branch
    %14 = sbr.rel (%p12) target = $region8
  $region5: #{patch_embed_forward.1} parent=0 // loop_body
    %s16 = ssub.s32 %s11, 1
    %s17 = ssub.s32 %s11, 2
    %s18 = sadd.s32 %s11, 1
    %s19 = ssub.s32 %s11, %s18
    %p20 = scmp.eq.s32.totalorder %s19, 0
    %s22 = sadd.s32 %s21, 1
    %s23 = scalar_select %p20, %s21, %s22
    %p26 = pneg %p20
    %p27 = scmp.eq.s32.totalorder %s11, 1
    %p28 = por %p26, %p27
    %p29 = scmp.ne.s32.totalorder %s21, %s24
    %p30 = scmp.eq.s32.totalorder %s11, 0
    %p31 = por %p29, %p30
    %p32 = scmp.ne.s32.totalorder %s21, %s24
    %p33 = scmp.eq.s32.totalorder %s16, 1
    %p34 = por %p32, %p33
    %p35 = scmp.ne.s32.totalorder %s24, %s25
    %p36 = scmp.eq.s32.totalorder %s16, 0
    %p37 = por %p35, %p36
    %p38 = scmp.ne.s32.totalorder %s24, %s25
    %p39 = scmp.eq.s32.totalorder %s17, 1
    %p40 = por %p38, %p39
    %p42 = scmp.ne.s32.totalorder %s25, %s41
    %p43 = scmp.eq.s32.totalorder %s17, 0
    %p44 = por %p42, %p43
    %s46 = sadd.s32 %s45, 1
    %p49 = scmp.eq.s32.totalorder %s11, 1
    %p50 = scmp.ne.s32.totalorder %s45, %s47
    %p51 = scmp.eq.s32.totalorder %s11, 0
    %p52 = por %p50, %p51
    %p53 = scmp.ne.s32.totalorder %s45, %s47
    %p54 = scmp.eq.s32.totalorder %s16, 1
    %p55 = por %p53, %p54
    %p56 = scmp.ne.s32.totalorder %s47, %s48
    %p57 = scmp.eq.s32.totalorder %s16, 0
    %p58 = por %p56, %p57
    %p59 = scmp.ne.s32.totalorder %s47, %s48
    %p60 = scmp.eq.s32.totalorder %s17, 1
    %p61 = por %p59, %p60
    %p63 = scmp.ne.s32.totalorder %s48, %s62
    %p64 = scmp.eq.s32.totalorder %s17, 0
    %p65 = por %p63, %p64
    %s67 = sadd.s32 %s66, 1
    %p70 = scmp.eq.s32.totalorder %s11, 1
    %p71 = scmp.ne.s32.totalorder %s66, %s68
    %p72 = scmp.eq.s32.totalorder %s11, 0
    %p73 = por %p71, %p72
    %p74 = scmp.ne.s32.totalorder %s66, %s68
    %p75 = scmp.eq.s32.totalorder %s16, 1
    %p76 = por %p74, %p75
    %p77 = scmp.ne.s32.totalorder %s68, %s69
    %p78 = scmp.eq.s32.totalorder %s16, 0
    %p79 = por %p77, %p78
    %p80 = scmp.ne.s32.totalorder %s68, %s69
    %p81 = scmp.eq.s32.totalorder %s17, 1
    %p82 = por %p80, %p81
    %p84 = scmp.ne.s32.totalorder %s69, %s83
    %p85 = scmp.eq.s32.totalorder %s17, 0
    %p86 = por %p84, %p85
    %s88 = sadd.s32 %s87, 1
    %p91 = scmp.eq.s32.totalorder %s11, 1
    %p92 = scmp.ne.s32.totalorder %s87, %s89
    %p93 = scmp.eq.s32.totalorder %s11, 0
    %p94 = por %p92, %p93
    %p95 = scmp.ne.s32.totalorder %s87, %s89
    %p96 = scmp.eq.s32.totalorder %s16, 1
    %p97 = por %p95, %p96
    %p98 = scmp.ne.s32.totalorder %s89, %s90
    %p99 = scmp.eq.s32.totalorder %s16, 0
    %p100 = por %p98, %p99
    %p101 = scmp.ne.s32.totalorder %s89, %s90
    %p102 = scmp.eq.s32.totalorder %s17, 1
    %p103 = por %p101, %p102
    %p105 = scmp.ne.s32.totalorder %s90, %s104
    %p106 = scmp.eq.s32.totalorder %s17, 0
    %p107 = por %p105, %p106
    %s109 = sadd.s32 %s108, 1
    %p112 = scmp.eq.s32.totalorder %s11, 1
    %p113 = scmp.ne.s32.totalorder %s108, %s110
    %p114 = scmp.eq.s32.totalorder %s11, 0
    %p115 = por %p113, %p114
    %p116 = scmp.ne.s32.totalorder %s108, %s110
    %p117 = scmp.eq.s32.totalorder %s16, 1
    %p118 = por %p116, %p117
    %p119 = scmp.ne.s32.totalorder %s110, %s111
    %p120 = scmp.eq.s32.totalorder %s16, 0
    %p121 = por %p119, %p120
    %p122 = scmp.ne.s32.totalorder %s110, %s111
    %p123 = scmp.eq.s32.totalorder %s17, 1
    %p124 = por %p122, %p123
    %p126 = scmp.ne.s32.totalorder %s111, %s125
    %p127 = scmp.eq.s32.totalorder %s17, 0
    %p128 = por %p126, %p127
    %s129 = ssub.s32 %s11, %s18
    %p130 = scmp.eq.s32.totalorder %s129, 0
    %s132 = sadd.s32 %s131, 1
    %s133 = scalar_select %p130, %s131, %s132
    %p136 = pneg %p130
    %p137 = scmp.eq.s32.totalorder %s11, 1
    %p138 = por %p136, %p137
    %p139 = scmp.ne.s32.totalorder %s131, %s134
    %p140 = scmp.eq.s32.totalorder %s11, 0
    %p141 = por %p139, %p140
    %p142 = scmp.ne.s32.totalorder %s131, %s134
    %p143 = scmp.eq.s32.totalorder %s16, 1
    %p144 = por %p142, %p143
    %p145 = scmp.ne.s32.totalorder %s134, %s135
    %p146 = scmp.eq.s32.totalorder %s16, 0
    %p147 = por %p145, %p146
    %p148 = scmp.ne.s32.totalorder %s134, %s135
    %p149 = scmp.eq.s32.totalorder %s17, 1
    %p150 = por %p148, %p149
    %p152 = scmp.ne.s32.totalorder %s135, %s151
    %p153 = scmp.eq.s32.totalorder %s17, 0
    %p154 = por %p152, %p153
    %p155 = scmp.le.s32.totalorder 1, %s11
    %p156 = scmp.lt.s32.totalorder %s11, 3
    %p157 = pnand %p155, %p156
    %p158 = pneg %p157
    // Predicated region
    $region9: #{patch_embed_forward.1} parent=5 // pred_check
      _
    $region10: #{patch_embed_forward.1} parent=5 // pred_check_branch
      %160 = sbr.rel (%p157) target = $region12
    $region11: #{patch_embed_forward.1} parent=5 // pred_region
      %s161 = ssub.s32 %s11, 1
      // Predicated region
      $region13: #{patch_embed_forward.1} parent=11 // pred_check
        %p162 = pneg %p58
      $region14: #{patch_embed_forward.1} parent=11 // pred_check_branch
        %164 = sbr.rel (%p162) target = $region16
      $region15: #{patch_embed_forward.1} parent=11 // pred_region
        _
      $region16: #{patch_embed_forward.1} parent=11 // pred_fallthru
        _
      // Predicated region
      $region17: #{patch_embed_forward.1} parent=11 // pred_check
        %p165 = pneg %p79
      $region18: #{patch_embed_forward.1} parent=11 // pred_check_branch
        %167 = sbr.rel (%p165) target = $region20
      $region19: #{patch_embed_forward.1} parent=11 // pred_region
        _
      $region20: #{patch_embed_forward.1} parent=11 // pred_fallthru
        _
      // Predicated region
      $region21: #{patch_embed_forward.1} parent=11 // pred_check
        %p168 = pneg %p100
      $region22: #{patch_embed_forward.1} parent=11 // pred_check_branch
        %170 = sbr.rel (%p168) target = $region24
      $region23: #{patch_embed_forward.1} parent=11 // pred_region
        _
      $region24: #{patch_embed_forward.1} parent=11 // pred_fallthru
        _
      // Predicated region
      $region25: #{patch_embed_forward.1} parent=11 // pred_check
        %p171 = pneg %p121
      $region26: #{patch_embed_forward.1} parent=11 // pred_check_branch
        %173 = sbr.rel (%p171) target = $region28
      $region27: #{patch_embed_forward.1} parent=11 // pred_region
        _
      $region28: #{patch_embed_forward.1} parent=11 // pred_fallthru
        _
    $region12: #{patch_embed_forward.1} parent=5 // pred_fallthru
      _
    %p174 = scmp.lt.s32.totalorder %s11, 2
    // Predicated region
    $region29: #{patch_embed_forward.1} parent=5 // pred_check
      %p175 = pneg %p174
    $region30: #{patch_embed_forward.1} parent=5 // pred_check_branch
      %177 = sbr.rel (%p175) target = $region32
    $region31: #{patch_embed_forward.1} parent=5 // pred_region
      // Predicated region
      $region33: #{patch_embed_forward.1} parent=31 // pred_check
        %p178 = pneg %p31
      $region34: #{patch_embed_forward.1} parent=31 // pred_check_branch
        %180 = sbr.rel (%p178) target = $region36
      $region35: #{patch_embed_forward.1} parent=31 // pred_region
        %s181 = smul.u32 8, %s11
        %p182 = scmp.lt.s32.totalorder %s181, 15
        %s183 = scalar_select %p182, %s181, 15
        %s184 = smul.addr %s183, 4
        %s185 = scalar_lea.vmem %s0, %s184
        %s186 = smul.u32 8, %s11
      $region36: #{patch_embed_forward.1} parent=31 // pred_fallthru
        _
    $region32: #{patch_embed_forward.1} parent=5 // pred_fallthru
      _
    %p187 = scmp.le.s32.totalorder 1, %s11
    %p188 = scmp.lt.s32.totalorder %s11, 3
    %p189 = pnand %p187, %p188
    %p190 = pneg %p189
    // Predicated region
    $region37: #{patch_embed_forward.1} parent=5 // pred_check
      _
    $region38: #{patch_embed_forward.1} parent=5 // pred_check_branch
      %192 = sbr.rel (%p189) target = $region40
    $region39: #{patch_embed_forward.1} parent=5 // pred_region
      %s193 = ssub.s32 %s11, 1
      %s194 = smul.u32 8, %s16
      %p195 = scmp.lt.s32.totalorder %s194, 15
      %s196 = scalar_select %p195, %s194, 15
      %s197 = smul.addr %s196, 4
      %s198 = scalar_lea.vmem %s0, %s197
      %p199 = pneg %p37
      %p200 = pneg %p34
      %p201 = pneg %p58
      %p202 = pneg %p55
      %p203 = pneg %p79
      %p204 = pneg %p76
      %p205 = pneg %p100
      %p206 = pneg %p97
      %p207 = pneg %p121
      %p208 = pneg %p118
      %p209 = pneg %p147
      %p210 = pneg %p144
      %p211 = scmp.lt.s32.totalorder %s16, 1
      %s212 = scalar_select %p211, %s16, 1
      %s213 = smul.addr %s212, 3
      %s214 = smul.addr %s213, 8
      %s215 = scalar_lea.vmem %s5, %s214
      %s216 = smul.u32 8, %s16
      %p217 = scmp.lt.s32.totalorder %s216, 15
      %s218 = scalar_select %p217, %s216, 15
      %s219 = smul.addr %s218, 4
      %s220 = scalar_lea.vmem %s0, %s219
      %s221 = smul.u32 8, %s16
      %p222 = scmp.lt.s32.totalorder %s16, 1
      %s223 = scalar_select %p222, %s16, 1
      %s224 = smul.addr %s223, 3
      %s225 = smul.addr %s224, 8
      %s226 = scalar_lea.vmem %s5, %s225
      %v228 = vld [vmem:[%s220] sm:$0xf]
      %v229 = vld [vmem:[%s220 + $0x4] sm:$0xf]
      %v230 = vld [vmem:[%s220 + $0x8] sm:$0xf]
      %v231 = vld [vmem:[%s220 + $0xc] sm:$0xf]
      %v232 = vld [vmem:[%s220 + $0x10] sm:$0xf]
      %v233 = vld [vmem:[%s220 + $0x14] sm:$0xf]
      %v234 = vld [vmem:[%s220 + $0x18] sm:$0xf]
      %v235 = vld [vmem:[%s220 + $0x1c] sm:$0xf]
      %v236 = vld [vmem:[%s1] sm:$0x3]
      %v237 = vld [vmem:[%s2] sm:$0x1]
      %v239 = vperm.slane %v237, 0
      %v249 = vunpack.c.l.b16 %v228
      %v250 = vunpack.c.l.b16 %v229
      %v251 = vunpack.c.l.b16 %v230
      %v252 = vunpack.c.l.b16 %v231
      %v253 = vunpack.c.l.b16 %v232
      %v254 = vunpack.c.l.b16 %v233
      %v255 = vunpack.c.l.b16 %v234
      %v256 = vunpack.c.l.b16 %v235
      %v257 = vpack.c.b16 %v250, %v249
      %v258 = vpack.c.b16 %v252, %v251
      %v259 = vpack.c.b16 %v254, %v253
      %v260 = vpack.c.b16 %v256, %v255
      %vm261 = vcmask 31744
      %v263 = vsel %vm261, %v257, 0
      %v266 = vsel %vm261, %v258, 0
      %v269 = vsel %vm261, %v259, 0
      %v272 = vsel %vm261, %v260, 0
      %vm274 = vcmask 1041408
      %v276 = vsel %vm274, %v236, 0
      %278 = vmatpush.bf16.msra.mxu0 0
      %279 = vmatpush.bf16.msra.mxu0 0
      %280 = vmatpush.bf16.msra.mxu0 0
      %281 = vmatpush.bf16.msra.mxu0 0
      %282 = vmatpush.bf16.msra.mxu0 0
      %283 = vmatpush.bf16.msra.mxu0 0
      %284 = vmatpush.bf16.msra.mxu0 0
      %285 = vmatpush.bf16.msra.mxu0 %v276
      %286 = vmatmul.bf16.gmra.mxu0 %v263
      %v287 = vpop.f32.mrf.mxu0
      %v288 = vadd.f32 %v239, %v287
      %v289 = vpop.f32.mrf.mxu0
      %v290 = vadd.f32 %v239, %v289
      %291 = vmatmul.bf16.gmra.mxu0 %v266
      %v292 = vpop.f32.mrf.mxu0
      %v293 = vadd.f32 %v239, %v292
      %v294 = vpop.f32.mrf.mxu0
      %v295 = vadd.f32 %v239, %v294
      %296 = vmatmul.bf16.gmra.mxu0 %v269
      %v297 = vpop.f32.mrf.mxu0
      %v298 = vadd.f32 %v239, %v297
      %v299 = vpop.f32.mrf.mxu0
      %v300 = vadd.f32 %v239, %v299
      %301 = vmatmul.bf16.gmra.mxu0 %v272
      %v302 = vpop.f32.mrf.mxu0
      %v303 = vadd.f32 %v239, %v302
      %v304 = vpop.f32.mrf.mxu0
      %v305 = vadd.f32 %v239, %v304
      %306 = vdwg.mxu0
      %vm307 = vcmask 195584
      %v308 = vsel %vm307, %v288, 0.0
      %309 = vadd.xlane.f32.xlu0 %v308
      %v310 = vpop.xlane.xlu0 %309
      %v311 = vsel %vm307, %v290, 0.0
      %312 = vadd.xlane.f32.xlu0 %v311
      %v313 = vpop.xlane.xlu0 %312
      %v314 = vsel %vm307, %v293, 0.0
      %315 = vadd.xlane.f32.xlu0 %v314
      %v316 = vpop.xlane.xlu0 %315
      %v317 = vsel %vm307, %v295, 0.0
      %318 = vadd.xlane.f32.xlu0 %v317
      %v319 = vpop.xlane.xlu0 %318
      %v320 = vsel %vm307, %v298, 0.0
      %321 = vadd.xlane.f32.xlu0 %v320
      %v322 = vpop.xlane.xlu0 %321
      %v323 = vsel %vm307, %v300, 0.0
      %324 = vadd.xlane.f32.xlu0 %v323
      %v325 = vpop.xlane.xlu0 %324
      %v326 = vsel %vm307, %v303, 0.0
      %327 = vadd.xlane.f32.xlu0 %v326
      %v328 = vpop.xlane.xlu0 %327
      %v329 = vsel %vm307, %v305, 0.0
      %330 = vadd.xlane.f32.xlu0 %v329
      %v331 = vpop.xlane.xlu0 %330
      %v332 = vrcp.pop 24.0
      %v333 = vmul.f32 24.0, %v332
      %v334 = vsub.f32 1.0, %v333
      %v335 = vmul.f32 %v332, %v334
      %v336 = vadd.f32 %v332, %v335
      %vm337 = vweird.f32 %v332
      %v338 = vsel %vm337, %v332, %v336
      %v339 = vmul.f32 %v310, %v338
      %v340 = vmul.f32 %v313, %v338
      %v341 = vmul.f32 %v316, %v338
      %v342 = vmul.f32 %v319, %v338
      %v343 = vmul.f32 %v322, %v338
      %v344 = vmul.f32 %v325, %v338
      %v345 = vmul.f32 %v328, %v338
      %v346 = vmul.f32 %v331, %v338
      %v347 = vsub.f32 %v288, %v339
      %v348 = vsub.f32 %v290, %v340
      %v349 = vsub.f32 %v293, %v341
      %v350 = vsub.f32 %v295, %v342
      %v351 = vsub.f32 %v298, %v343
      %v352 = vsub.f32 %v300, %v344
      %v353 = vsub.f32 %v303, %v345
      %v354 = vsub.f32 %v305, %v346
      %v355 = vmul.f32 %v347, %v347
      %v356 = vmul.f32 %v348, %v348
      %v357 = vmul.f32 %v349, %v349
      %v358 = vmul.f32 %v350, %v350
      %v359 = vmul.f32 %v351, %v351
      %v360 = vmul.f32 %v352, %v352
      %v361 = vmul.f32 %v353, %v353
      %v362 = vmul.f32 %v354, %v354
      %v363 = vsel %vm307, %v355, 0.0
      %364 = vadd.xlane.f32.xlu0 %v363
      %v365 = vpop.xlane.xlu0 %364
      %v366 = vsel %vm307, %v356, 0.0
      %367 = vadd.xlane.f32.xlu0 %v366
      %v368 = vpop.xlane.xlu0 %367
      %v369 = vsel %vm307, %v357, 0.0
      %370 = vadd.xlane.f32.xlu0 %v369
      %v371 = vpop.xlane.xlu0 %370
      %v372 = vsel %vm307, %v358, 0.0
      %373 = vadd.xlane.f32.xlu0 %v372
      %v374 = vpop.xlane.xlu0 %373
      %v375 = vsel %vm307, %v359, 0.0
      %376 = vadd.xlane.f32.xlu0 %v375
      %v377 = vpop.xlane.xlu0 %376
      %v378 = vsel %vm307, %v360, 0.0
      %379 = vadd.xlane.f32.xlu0 %v378
      %v380 = vpop.xlane.xlu0 %379
      %v381 = vsel %vm307, %v361, 0.0
      %382 = vadd.xlane.f32.xlu0 %v381
      %v383 = vpop.xlane.xlu0 %382
      %v384 = vsel %vm307, %v362, 0.0
      %385 = vadd.xlane.f32.xlu0 %v384
      %v386 = vpop.xlane.xlu0 %385
      %v387 = vmul.f32 %v365, %v338
      %v388 = vmul.f32 %v368, %v338
      %v389 = vmul.f32 %v371, %v338
      %v390 = vmul.f32 %v374, %v338
      %v391 = vmul.f32 %v377, %v338
      %v392 = vmul.f32 %v380, %v338
      %v393 = vmul.f32 %v383, %v338
      %v394 = vmul.f32 %v386, %v338
      %v395 = vadd.f32 %v387, 1e-05
      %v396 = vadd.f32 %v388, 1e-05
      %v397 = vadd.f32 %v389, 1e-05
      %v398 = vadd.f32 %v390, 1e-05
      %v399 = vadd.f32 %v391, 1e-05
      %v400 = vadd.f32 %v392, 1e-05
      %v401 = vadd.f32 %v393, 1e-05
      %v402 = vadd.f32 %v394, 1e-05
      %v403 = vrsqrt.pop %v395
      %v404 = vmul.f32 %v403, %v395
      %v405 = vmul.f32 %v404, %v403
      %v406 = vmul.f32 0.5, %v405
      %v407 = vsub.f32 1.5, %v406
      %v408 = vmul.f32 %v403, %v407
      %vm409 = vweird.f32 %v395
      %vm410 = vweird.f32 %v403
      %vm411 = vmor %vm409, %vm410
      %v412 = vsel %vm411, %v403, %v408
      %v413 = vrsqrt.pop %v396
      %v414 = vmul.f32 %v413, %v396
      %v415 = vmul.f32 %v414, %v413
      %v416 = vmul.f32 0.5, %v415
      %v417 = vsub.f32 1.5, %v416
      %v418 = vmul.f32 %v413, %v417
      %vm419 = vweird.f32 %v396
      %vm420 = vweird.f32 %v413
      %vm421 = vmor %vm419, %vm420
      %v422 = vsel %vm421, %v413, %v418
      %v423 = vrsqrt.pop %v397
      %v424 = vmul.f32 %v423, %v397
      %v425 = vmul.f32 %v424, %v423
      %v426 = vmul.f32 0.5, %v425
      %v427 = vsub.f32 1.5, %v426
      %v428 = vmul.f32 %v423, %v427
      %vm429 = vweird.f32 %v397
      %vm430 = vweird.f32 %v423
      %vm431 = vmor %vm429, %vm430
      %v432 = vsel %vm431, %v423, %v428
      %v433 = vrsqrt.pop %v398
      %v434 = vmul.f32 %v433, %v398
      %v435 = vmul.f32 %v434, %v433
      %v436 = vmul.f32 0.5, %v435
      %v437 = vsub.f32 1.5, %v436
      %v438 = vmul.f32 %v433, %v437
      %vm439 = vweird.f32 %v398
      %vm440 = vweird.f32 %v433
      %vm441 = vmor %vm439, %vm440
      %v442 = vsel %vm441, %v433, %v438
      %v443 = vrsqrt.pop %v399
      %v444 = vmul.f32 %v443, %v399
      %v445 = vmul.f32 %v444, %v443
      %v446 = vmul.f32 0.5, %v445
      %v447 = vsub.f32 1.5, %v446
      %v448 = vmul.f32 %v443, %v447
      %vm449 = vweird.f32 %v399
      %vm450 = vweird.f32 %v443
      %vm451 = vmor %vm449, %vm450
      %v452 = vsel %vm451, %v443, %v448
      %v453 = vrsqrt.pop %v400
      %v454 = vmul.f32 %v453, %v400
      %v455 = vmul.f32 %v454, %v453
      %v456 = vmul.f32 0.5, %v455
      %v457 = vsub.f32 1.5, %v456
      %v458 = vmul.f32 %v453, %v457
      %vm459 = vweird.f32 %v400
      %vm460 = vweird.f32 %v453
      %vm461 = vmor %vm459, %vm460
      %v462 = vsel %vm461, %v453, %v458
      %v463 = vrsqrt.pop %v401
      %v464 = vmul.f32 %v463, %v401
      %v465 = vmul.f32 %v464, %v463
      %v466 = vmul.f32 0.5, %v465
      %v467 = vsub.f32 1.5, %v466
      %v468 = vmul.f32 %v463, %v467
      %vm469 = vweird.f32 %v401
      %vm470 = vweird.f32 %v463
      %vm471 = vmor %vm469, %vm470
      %v472 = vsel %vm471, %v463, %v468
      %v473 = vrsqrt.pop %v402
      %v474 = vmul.f32 %v473, %v402
      %v475 = vmul.f32 %v474, %v473
      %v476 = vmul.f32 0.5, %v475
      %v477 = vsub.f32 1.5, %v476
      %v478 = vmul.f32 %v473, %v477
      %vm479 = vweird.f32 %v402
      %vm480 = vweird.f32 %v473
      %vm481 = vmor %vm479, %vm480
      %v482 = vsel %vm481, %v473, %v478
      %v483 = vld [vmem:[%s3] sm:$0x1]
      %v485 = vperm.slane %v483, 0
      %v487 = vmul.f32 %v412, %v485
      %v488 = vmul.f32 %v422, %v485
      %v489 = vmul.f32 %v432, %v485
      %v490 = vmul.f32 %v442, %v485
      %v491 = vmul.f32 %v452, %v485
      %v492 = vmul.f32 %v462, %v485
      %v493 = vmul.f32 %v472, %v485
      %v494 = vmul.f32 %v482, %v485
      %v495 = vmul.f32 %v347, %v487
      %v496 = vmul.f32 %v348, %v488
      %v497 = vmul.f32 %v349, %v489
      %v498 = vmul.f32 %v350, %v490
      %v499 = vmul.f32 %v351, %v491
      %v500 = vmul.f32 %v352, %v492
      %v501 = vmul.f32 %v353, %v493
      %v502 = vmul.f32 %v354, %v494
      %v503 = vld [vmem:[%s4] sm:$0xff]
      %v504 = vld [vmem:[%s4 + $0x8] sm:$0xff]
      %v505 = vld [vmem:[%s4 + $0x10] sm:$0xff]
      %v506 = vld [vmem:[%s4 + $0x18] sm:$0xff]
      %v507 = vld [vmem:[%s4 + $0x20] sm:$0xff]
      %v508 = vld [vmem:[%s4 + $0x28] sm:$0xff]
      %v509 = vld [vmem:[%s4 + $0x30] sm:$0xff]
      %v510 = vld [vmem:[%s4 + $0x38] sm:$0xff]
      %v511 = vadd.f32 %v495, %v503
      %v512 = vadd.f32 %v496, %v504
      %v513 = vadd.f32 %v497, %v505
      %v514 = vadd.f32 %v498, %v506
      %v515 = vadd.f32 %v499, %v507
      %v516 = vadd.f32 %v500, %v508
      %v517 = vadd.f32 %v501, %v509
      %v518 = vadd.f32 %v502, %v510
      %519 = vxpose.xlu0.b32.start [1/16] %v511, 128
      %520 = vxpose.xlu0.b32.cont [2/16] %v512, 128
      %521 = vxpose.xlu0.b32.cont [3/16] %v513, 128
      %522 = vxpose.xlu0.b32.cont [4/16] %v514, 128
      %523 = vxpose.xlu0.b32.cont [5/16] %v515, 128
      %524 = vxpose.xlu0.b32.cont [6/16] %v516, 128
      %525 = vxpose.xlu0.b32.cont [7/16] %v517, 128
      %526 = vxpose.xlu0.b32.cont [8/16] %v518, 128
      %527 = vxpose.xlu0.b32.cont [9/16] 0.0, 128
      %528 = vxpose.xlu0.b32.cont [10/16] 0.0, 128
      %529 = vxpose.xlu0.b32.cont [11/16] 0.0, 128
      %530 = vxpose.xlu0.b32.cont [12/16] 0.0, 128
      %531 = vxpose.xlu0.b32.cont [13/16] 0.0, 128
      %532 = vxpose.xlu0.b32.cont [14/16] 0.0, 128
      %533 = vxpose.xlu0.b32.cont [15/16] 0.0, 128
      %534 = vxpose.xlu0.b32.end [16/16] 0.0, 128
      %v535 = vpop.trf.xlu0
      %v536 = vpop.trf.xlu0
      %v537 = vpop.trf.xlu0
      %v538 = vpop.trf.xlu0
      %v539 = vpop.trf.xlu0
      %v540 = vpop.trf.xlu0
      %v541 = vpop.trf.xlu0
      %v542 = vpop.trf.xlu0
      %v543 = vpop.trf.xlu0
      %v544 = vpop.trf.xlu0
      %v545 = vpop.trf.xlu0
      %v546 = vpop.trf.xlu0
      %v547 = vpop.trf.xlu0
      %v548 = vpop.trf.xlu0
      %v549 = vpop.trf.xlu0
      %v550 = vpop.trf.xlu0
      %vm551 = vcmask 523264
      %552 = vst.msk [vmem:[%s226] sm:$0xff] %vm551, %v535
      %553 = vst.msk [vmem:[%s226 + $0x8] sm:$0xff] %vm551, %v536
      %554 = vst.msk [vmem:[%s226 + $0x10] sm:$0xff] %vm551, %v537
      %p555 = scmp.lt.s32.totalorder %s16, 1
      %s556 = scalar_select %p555, %s16, 1
      %s557 = smul.addr %s556, 3
      %s558 = smul.addr %s557, 8
      %s559 = scalar_lea.vmem %s5, %s558
      // Predicated region
      $region41: #{patch_embed_forward.1} parent=39 // pred_check
        %p560 = pneg %p144
      $region42: #{patch_embed_forward.1} parent=39 // pred_check_branch
        %562 = sbr.rel (%p560) target = $region44
      $region43: #{patch_embed_forward.1} parent=39 // pred_region
        _
      $region44: #{patch_embed_forward.1} parent=39 // pred_fallthru
        _
    $region40: #{patch_embed_forward.1} parent=5 // pred_fallthru
      _
    %p563 = scmp.le.s32.totalorder 2, %s11
    // Predicated region
    $region45: #{patch_embed_forward.1} parent=5 // pred_check
      %p564 = pneg %p563
    $region46: #{patch_embed_forward.1} parent=5 // pred_check_branch
      %566 = sbr.rel (%p564) target = $region48
    $region47: #{patch_embed_forward.1} parent=5 // pred_region
      %s567 = ssub.s32 %s11, 2
      // Predicated region
      $region49: #{patch_embed_forward.1} parent=47 // pred_check
        %p568 = pneg %p150
      $region50: #{patch_embed_forward.1} parent=47 // pred_check_branch
        %570 = sbr.rel (%p568) target = $region52
      $region51: #{patch_embed_forward.1} parent=47 // pred_region
        %p571 = scmp.lt.s32.totalorder %s17, 1
        %s572 = scalar_select %p571, %s17, 1
        %s573 = smul.addr %s572, 3
        %s574 = smul.addr %s573, 8
        %s575 = scalar_lea.vmem %s5, %s574
      $region52: #{patch_embed_forward.1} parent=47 // pred_fallthru
        _
    $region48: #{patch_embed_forward.1} parent=5 // pred_fallthru
      _
  $region6: #{patch_embed_forward.1} parent=0 // loop_footer
    %s15 = sadd.s32 1, %s11
  $region7: #{patch_embed_forward.1} parent=0 // loop_footer_branch
    %10 = sbr.rel target = $region3
  $region8: #{patch_embed_forward.1} parent=0 // loop_exit
    _

</llo_original>
